<compile_context>
chip_gen: v7x
topology: tpu7x:2x2x1
jax: 0.10.0
libtpu: 0.0.40
codegen_flags: <defaults>
</compile_context>

<pallas_src>
import jax
import jax.numpy as jnp
from jax import lax
from jax.experimental import pallas as pl
from jax.experimental.pallas import tpu as pltpu


# ----------------------------------------------------------------------------
# Hardware-aware VMEM budgeting.
# ----------------------------------------------------------------------------
def _vmem_capacity_bytes():
    try:
        return int(pltpu.get_tpu_info().vmem_capacity_bytes)
    except Exception:
        # Conservative fallback: v7x per-TensorCore VMEM.
        return 64 * 1024 * 1024


def _maybe_vmem_limit(need_bytes, cap_bytes):
    """Return an explicit vmem_limit_bytes when the footprint exceeds the
    default scoped limit, capped safely under physical VMEM."""
    if need_bytes <= 24 * 1024 * 1024:
        return None
    return int(min(need_bytes + (8 << 20), int(0.85 * cap_bytes)))


# ----------------------------------------------------------------------------
# Fused path: whole depth chain in one grid step per batch tile.
# ----------------------------------------------------------------------------
def _repeat_fused_kernel(x_ref, w_ref, b_ref, o_ref):
    # x_ref: (TB, H) input; w_ref: (D, H, H) bf16; b_ref: (D, 1, H) f32; o_ref: (TB, H)
    depth = w_ref.shape[0]
    h0 = x_ref[...].astype(jnp.float32)

    def body(d, h):
        w = w_ref[d]                                  # (H, H) bf16 weight for block d
        b = b_ref[d]                                  # (1, H) f32 bias
        # bf16 x bf16 -> f32 accumulate on the MXU; bias/ReLU on the VPU in f32.
        acc = jnp.dot(h.astype(jnp.bfloat16), w, preferred_element_type=jnp.float32)
        return jnp.maximum(acc + b, 0.0)

    h = lax.fori_loop(0, depth, body, h0, unroll=True)
    o_ref[...] = h.astype(o_ref.dtype)


def _repeat_fused(x, w, b, vmem_limit):
    B, H = x.shape
    D = w.shape[0]
    # Batch tiling: pipeline + megacore-shard the batch when it is large.
    tb = 256 if (B > 256 and B % 256 == 0) else B
    grid = (B // tb,)
    return pl.pallas_call(
        _repeat_fused_kernel,
        out_shape=jax.ShapeDtypeStruct((B, H), x.dtype),
        grid_spec=pltpu.PrefetchScalarGridSpec(
            num_scalar_prefetch=0,
            grid=grid,
            in_specs=[
                pl.BlockSpec((tb, H), lambda i: (i, 0)),        # batch tile of x
                pl.BlockSpec((D, H, H), lambda i: (0, 0, 0)),   # all weights, resident
                pl.BlockSpec((D, 1, H), lambda i: (0, 0, 0)),   # all biases, resident
            ],
            out_specs=pl.BlockSpec((tb, H), lambda i: (i, 0)),
        ),
        compiler_params=pltpu.CompilerParams(
            dimension_semantics=("parallel",),
            vmem_limit_bytes=vmem_limit,
        ),
    )(x, w, b)


# ----------------------------------------------------------------------------
# Streamed fallback: one grid step per block, per-depth weight tile streamed,
# f32 VMEM scratch carries the activation across depth; output written once.
# ----------------------------------------------------------------------------
def _repeat_streamed_kernel(x_ref, w_ref, b_ref, o_ref, acc_ref):
    d = pl.program_id(0)

    @pl.when(d == 0)
    def _():
        acc_ref[...] = x_ref[...].astype(jnp.float32)

    h = acc_ref[...]                                   # f32 activation
    w = w_ref[...]                                     # (H, H) bf16, streamed per depth
    h = jnp.dot(h.astype(jnp.bfloat16), w, preferred_element_type=jnp.float32)
    h = jnp.maximum(h + b_ref[d], 0.0)                 # b_ref resident (D,1,H); b_ref[d]=(1,H)
    acc_ref[...] = h

    @pl.when(d == pl.num_programs(0) - 1)
    def _():
        o_ref[...] = acc_ref[...].astype(o_ref.dtype)


def _repeat_streamed(x, w, b, vmem_limit):
    B, H = x.shape
    D = w.shape[0]
    return pl.pallas_call(
        _repeat_streamed_kernel,
        out_shape=jax.ShapeDtypeStruct((B, H), x.dtype),
        grid_spec=pltpu.PrefetchScalarGridSpec(
            num_scalar_prefetch=0,
            grid=(D,),
            in_specs=[
                # x: only read at d==0, constant block index.
                pl.BlockSpec((B, H), lambda d: (0, 0)),
                # Per-depth weight tile (depth dim squeezed out in-kernel).
                pl.BlockSpec((pl.Squeezed(), H, H), lambda d: (d, 0, 0)),
                # All biases resident across the depth axis (tiny).
                pl.BlockSpec((D, 1, H), lambda d: (0, 0, 0)),
            ],
            # Constant block index across depth -> written back to HBM once.
            out_specs=pl.BlockSpec((B, H), lambda d: (0, 0)),
            scratch_shapes=[pltpu.VMEM((B, H), jnp.float32)],
        ),
        compiler_params=pltpu.CompilerParams(
            dimension_semantics=("arbitrary",),
            vmem_limit_bytes=vmem_limit,
        ),
    )(x, w, b)


# ----------------------------------------------------------------------------
# Params init (hoisted one-time cast) and wrapper: Repeat.forward.
# ----------------------------------------------------------------------------
def init_repeat_params(weights, biases):
    """One-time prep of the block parameters: weights stored in bf16 for the
    HBM-bound weight stream, biases in f32 (shape (D, 1, H))."""
    D = weights.shape[0]
    H = weights.shape[-1]
    w = jnp.asarray(weights, dtype=jnp.bfloat16)
    b = jnp.asarray(biases, dtype=jnp.float32).reshape(D, 1, H)
    return w, b


def repeat_forward(x, w, b, *, force_streamed=False):
    """x: (B, H); w: (D, H, H) bf16; b: (D, 1, H) f32.

    Note: for many tiny NAS candidates, batch/concatenate inputs before calling
    (the kernel is launch + DMA-prologue latency bound at B=8, H=128)."""
    B, H = x.shape
    D = w.shape[0]
    cap = _vmem_capacity_bytes()

    # Fused footprint, counting default 2x double-buffering of every block.
    tb = 256 if (B > 256 and B % 256 == 0) else B
    fused_bytes = (2 * D * H * H * w.dtype.itemsize        # weights (resident, 2 bufs)
                   + 2 * D * H * b.dtype.itemsize          # biases
                   + 2 * tb * H * x.dtype.itemsize         # x tile
                   + 2 * tb * H * x.dtype.itemsize)        # out tile
    fused_budget = max(16 * 1024 * 1024, int(0.6 * cap))

    if (not force_streamed) and fused_bytes <= fused_budget:
        return _repeat_fused(x, w, b, _maybe_vmem_limit(fused_bytes, cap))

    # Streamed footprint (also 2x-buffered) + the f32 activation scratch.
    streamed_bytes = (2 * H * H * w.dtype.itemsize
                      + 2 * D * H * b.dtype.itemsize
                      + 2 * B * H * x.dtype.itemsize
                      + 2 * B * H * x.dtype.itemsize
                      + B * H * 4)
    return _repeat_streamed(x, w, b, _maybe_vmem_limit(streamed_bytes, cap))


def repeat_reference(x, w, b):
    """Pure-JAX reference matching the kernel's numerics (bf16 MXU feed,
    f32 accumulation, f32 bias + ReLU)."""
    h = x.astype(jnp.float32)
    for d in range(w.shape[0]):
        acc = jnp.dot(h.astype(jnp.bfloat16), w[d], preferred_element_type=jnp.float32)
        h = jnp.maximum(acc + b[d], 0.0)
    return h.astype(x.dtype)


if __name__ == "__main__":
    # Module config: Repeat(block_factory, depth=3) with block = Linear(128,128)+ReLU
    batch = 8
    hidden = 128
    depth = 3  # fixed repeat count (min_depth == max_depth == 3)

    key = jax.random.PRNGKey(0)
    kx, kw, kb = jax.random.split(key, 3)

    x = jax.random.normal(kx, (batch, hidden), dtype=jnp.float32)
    weights = (
        jax.random.normal(kw, (depth, hidden, hidden), dtype=jnp.float32)
        * (1.0 / jnp.sqrt(hidden))
    )
    biases = jax.random.normal(kb, (depth, 1, hidden), dtype=jnp.float32) * 0.01

    # One-time parameter prep (hoisted bf16 weight cast).
    w_bf16, b_f32 = init_repeat_params(weights, biases)

    ref = repeat_reference(x, w_bf16, b_f32)

    # Fused (default) path.
    out_fused = jax.block_until_ready(repeat_forward(x, w_bf16, b_f32))
    assert out_fused.shape == (batch, hidden)
    assert jnp.allclose(out_fused, ref, atol=5e-3, rtol=5e-3), "fused path mismatch"

    # Streamed fallback path (exercised explicitly to keep it validated).
    out_stream = jax.block_until_ready(
        repeat_forward(x, w_bf16, b_f32, force_streamed=True)
    )
    assert jnp.allclose(out_stream, ref, atol=5e-3, rtol=5e-3), "streamed path mismatch"

    # TODO(synk): the variable-depth / label-driven NAS search-space machinery of
    # Repeat (choosing depth in [min_depth, max_depth] at mutation time) has no
    # Pallas equivalent; this kernel implements the fixed max_depth forward chain.
    print("KERNEL_OK")
</pallas_src>

<mosaic_0001>
module attributes {stable_mosaic.version = 11 : i64} {
  func.func @_repeat_fused_kernel(%arg0: i32, %arg1: memref<8x128xf32, #tpu.memory_space<vmem>>, %arg2: memref<3x128x128xbf16, #tpu.memory_space<vmem>>, %arg3: memref<3x1x128xf32, #tpu.memory_space<vmem>>, %arg4: memref<8x128xf32, #tpu.memory_space<vmem>>) attributes {dimension_semantics = [#tpu.dimension_semantics<parallel>], iteration_bounds = array<i64: 1>, scalar_prefetch = 0 : i64, scratch_operands = 0 : i64, tpu.core_type = #tpu.core_type<tc>, window_params = [{transform_indices = @transform_0, window_bounds = array<i64: 8, 128>}, {pipeline_mode = #tpu.pipeline_mode<synchronous>, transform_indices = @transform_1, window_bounds = array<i64: 3, 128, 128>}, {pipeline_mode = #tpu.pipeline_mode<synchronous>, transform_indices = @transform_2, window_bounds = array<i64: 3, 1, 128>}, {transform_indices = @transform_3, window_bounds = array<i64: 8, 128>}]} {
    %c0 = arith.constant 0 : index
    %c0_0 = arith.constant 0 : index
    %0 = vector.load %arg1[%c0, %c0_0] : memref<8x128xf32, #tpu.memory_space<vmem>>, vector<8x128xf32>
    %c0_i32 = arith.constant 0 : i32
    %1 = arith.index_cast %c0_i32 : i32 to index
    %c0_1 = arith.constant 0 : index
    %c0_2 = arith.constant 0 : index
    %2 = vector.load %arg2[%1, %c0_1, %c0_2] : memref<3x128x128xbf16, #tpu.memory_space<vmem>>, vector<1x128x128xbf16>
    %3 = vector.shape_cast %2 : vector<1x128x128xbf16> to vector<128x128xbf16>
    %4 = arith.index_cast %c0_i32 : i32 to index
    %c0_3 = arith.constant 0 : index
    %c0_4 = arith.constant 0 : index
    %5 = vector.load %arg3[%4, %c0_3, %c0_4] : memref<3x1x128xf32, #tpu.memory_space<vmem>>, vector<1x1x128xf32>
    %6 = vector.shape_cast %5 : vector<1x1x128xf32> to vector<1x128xf32>
    %7 = arith.truncf %0 : vector<8x128xf32> to vector<8x128xbf16>
    %cst = arith.constant dense<0.000000e+00> : vector<8x128xf32>
    %8 = tpu.matmul %7, %3, %cst {dimension_numbers = #tpu.dot_dimension_numbers<[1], [0], [0], [1], [0, 0, 1, 1], [], []>} : vector<8x128xbf16>, vector<128x128xbf16>, vector<8x128xf32> -> vector<8x128xf32>
    %9 = vector.broadcast %6 : vector<1x128xf32> to vector<8x128xf32>
    %10 = arith.addf %8, %9 : vector<8x128xf32>
    %cst_5 = arith.constant 0.000000e+00 : f32
    %11 = vector.broadcast %cst_5 : f32 to vector<8x128xf32>
    %12 = arith.maximumf %10, %11 : vector<8x128xf32>
    %c1_i32 = arith.constant 1 : i32
    %13 = arith.index_cast %c1_i32 : i32 to index
    %c0_6 = arith.constant 0 : index
    %c0_7 = arith.constant 0 : index
    %14 = vector.load %arg2[%13, %c0_6, %c0_7] : memref<3x128x128xbf16, #tpu.memory_space<vmem>>, vector<1x128x128xbf16>
    %15 = vector.shape_cast %14 : vector<1x128x128xbf16> to vector<128x128xbf16>
    %16 = arith.index_cast %c1_i32 : i32 to index
    %c0_8 = arith.constant 0 : index
    %c0_9 = arith.constant 0 : index
    %17 = vector.load %arg3[%16, %c0_8, %c0_9] : memref<3x1x128xf32, #tpu.memory_space<vmem>>, vector<1x1x128xf32>
    %18 = vector.shape_cast %17 : vector<1x1x128xf32> to vector<1x128xf32>
    %19 = arith.truncf %12 : vector<8x128xf32> to vector<8x128xbf16>
    %cst_10 = arith.constant dense<0.000000e+00> : vector<8x128xf32>
    %20 = tpu.matmul %19, %15, %cst_10 {dimension_numbers = #tpu.dot_dimension_numbers<[1], [0], [0], [1], [0, 0, 1, 1], [], []>} : vector<8x128xbf16>, vector<128x128xbf16>, vector<8x128xf32> -> vector<8x128xf32>
    %21 = vector.broadcast %18 : vector<1x128xf32> to vector<8x128xf32>
    %22 = arith.addf %20, %21 : vector<8x128xf32>
    %cst_11 = arith.constant 0.000000e+00 : f32
    %23 = vector.broadcast %cst_11 : f32 to vector<8x128xf32>
    %24 = arith.maximumf %22, %23 : vector<8x128xf32>
    %c2_i32 = arith.constant 2 : i32
    %25 = arith.index_cast %c2_i32 : i32 to index
    %c0_12 = arith.constant 0 : index
    %c0_13 = arith.constant 0 : index
    %26 = vector.load %arg2[%25, %c0_12, %c0_13] : memref<3x128x128xbf16, #tpu.memory_space<vmem>>, vector<1x128x128xbf16>
    %27 = vector.shape_cast %26 : vector<1x128x128xbf16> to vector<128x128xbf16>
    %28 = arith.index_cast %c2_i32 : i32 to index
    %c0_14 = arith.constant 0 : index
    %c0_15 = arith.constant 0 : index
    %29 = vector.load %arg3[%28, %c0_14, %c0_15] : memref<3x1x128xf32, #tpu.memory_space<vmem>>, vector<1x1x128xf32>
    %30 = vector.shape_cast %29 : vector<1x1x128xf32> to vector<1x128xf32>
    %31 = arith.truncf %24 : vector<8x128xf32> to vector<8x128xbf16>
    %cst_16 = arith.constant dense<0.000000e+00> : vector<8x128xf32>
    %32 = tpu.matmul %31, %27, %cst_16 {dimension_numbers = #tpu.dot_dimension_numbers<[1], [0], [0], [1], [0, 0, 1, 1], [], []>} : vector<8x128xbf16>, vector<128x128xbf16>, vector<8x128xf32> -> vector<8x128xf32>
    %33 = vector.broadcast %30 : vector<1x128xf32> to vector<8x128xf32>
    %34 = arith.addf %32, %33 : vector<8x128xf32>
    %cst_17 = arith.constant 0.000000e+00 : f32
    %35 = vector.broadcast %cst_17 : f32 to vector<8x128xf32>
    %36 = arith.maximumf %34, %35 : vector<8x128xf32>
    %c3_i32 = arith.constant 3 : i32
    %c0_18 = arith.constant 0 : index
    %c0_19 = arith.constant 0 : index
    %37 = vector.load %arg4[%c0_18, %c0_19] : memref<8x128xf32, #tpu.memory_space<vmem>>, vector<8x128xf32>
    tpu.vector_store %arg4[%c0_18, %c0_19], %36 {strides = array<i32>} : memref<8x128xf32, #tpu.memory_space<vmem>>, vector<8x128xf32>,
    return
  }
  func.func @transform_0(%arg0: i32) -> (i32, i32) {
    %c0_i32 = arith.constant 0 : i32
    %c0_i32_0 = arith.constant 0 : i32
    return %arg0, %c0_i32 : i32, i32
  }
  func.func @transform_1(%arg0: i32) -> (i32, i32, i32) {
    %c0_i32 = arith.constant 0 : i32
    %c0_i32_0 = arith.constant 0 : i32
    %c0_i32_1 = arith.constant 0 : i32
    %c0_i32_2 = arith.constant 0 : i32
    return %c0_i32, %c0_i32_0, %c0_i32_1 : i32, i32, i32
  }
  func.func @transform_2(%arg0: i32) -> (i32, i32, i32) {
    %c0_i32 = arith.constant 0 : i32
    %c0_i32_0 = arith.constant 0 : i32
    %c0_i32_1 = arith.constant 0 : i32
    %c0_i32_2 = arith.constant 0 : i32
    return %c0_i32, %c0_i32_0, %c0_i32_1 : i32, i32, i32
  }
  func.func @transform_3(%arg0: i32) -> (i32, i32) {
    %c0_i32 = arith.constant 0 : i32
    %c0_i32_0 = arith.constant 0 : i32
    return %arg0, %c0_i32 : i32, i32
  }
}

</mosaic_0001>

<llo_original>
// kernel: tpu_custom_call.1
$region0: #{tpu_custom_call.1}
  #allocation0 [shape = 'u32[]', space=smem, size = 0x4, offset = 0x4, fixed_abs, tag = 'smem constant byte address 0x4 - core index']
  #allocation1 [shape = 'u32[144,128]{1,0:T(1,128)}', space=vmem, size = 0x12000, scoped, tag = 'internal scratch']
  %s0 = inlined_call_operand.hbm [shape: f32[8,128], index: 0, kind: input, shape index: {}]
  %s1 = inlined_call_operand.hbm [shape: bf16[3,128,128], index: 1, kind: input, shape index: {}]
  %s2 = inlined_call_operand.vmem [shape: f32[3,1,128], index: 2, kind: input, shape index: {}]
  %s3 = inlined_call_operand.hbm [shape: f32[8,128], index: 3, kind: output, shape index: {}]
  %s4 = sld [smem:[#allocation0]]
  $region30: #{tpu_custom_call.1} parent=0
    _
  %s6 = ssub.s32 1, %s4
  %s7 = scalar_select 0, %s6, %s4
  $region1: #{tpu_custom_call.1} parent=0
    #allocation2 [shape = 'u8[4096]{0}', space=vmem, size = 0x1000, scoped, tag = 'input window, operand 0, single buffered']
    #allocation3 [shape = 's32[1]{0}', space=sflag, size = 0x4, scoped, tag = 'scoped memory for tpu_custom_call.1']
    #allocation4 [shape = 's32[1]{0}', space=sflag, size = 0x4, scoped, tag = 'scoped memory for tpu_custom_call.1']
    #allocation5 [shape = 'u8[98304]{0}', space=vmem, size = 0x18000, scoped, tag = 'input window, operand 1, single buffered']
    #allocation6 [shape = 's32[1]{0}', space=sflag, size = 0x4, scoped, tag = 'scoped memory for tpu_custom_call.1']
    #allocation7 [shape = 'u8[4096]{0}', space=vmem, size = 0x1000, scoped, tag = 'output window, operand 0, single buffered']
    %8 = vsyncpa [#allocation3], 0
    %9 = vsyncpa [#allocation6], 0
    %10 = vsyncpa [#allocation4], 0
    // Predicated region
    $region2: #{tpu_custom_call.1} parent=1 // pred_check
      _
    $region3: #{tpu_custom_call.1} parent=1 // pred_check_branch
      %12 = sbr.rel (0) target = $region5
    $region4: #{tpu_custom_call.1} parent=1 // pred_region
      %s14 = ssub.s32 128, 128
      %15 = vsyncadd [#allocation3], %s14
      %s17 = sshll.u32 [#allocation2], 4
      %s18 = int_to_ptr.vmem [resolvable:$true] %s17
      %20 = dma.hbm_to_vmem [thread:$0]  %s0, 128, %s18, [#allocation3]
    $region5: #{tpu_custom_call.1} parent=1 // pred_fallthru
      _
    // Predicated region
    $region6: #{tpu_custom_call.1} parent=1 // pred_check
      _
    $region7: #{tpu_custom_call.1} parent=1 // pred_check_branch
      %22 = sbr.rel (0) target = $region9
    $region8: #{tpu_custom_call.1} parent=1 // pred_region
      %s24 = ssub.s32 3072, 3072
      %25 = vsyncadd [#allocation6], %s24
      %s26 = sshll.u32 [#allocation5], 4
      %s27 = int_to_ptr.vmem [resolvable:$true] %s26
      %32 = dma.hbm_to_vmem [thread:$0]  %s1, 3072, %s27, [#allocation6], 64, 64, 4
    $region9: #{tpu_custom_call.1} parent=1 // pred_fallthru
      _
    // Predicated region
    $region10: #{tpu_custom_call.1} parent=1 // pred_check
      _
    $region11: #{tpu_custom_call.1} parent=1 // pred_check_branch
      %34 = sbr.rel (0) target = $region13
    $region12: #{tpu_custom_call.1} parent=1 // pred_region
      _
    $region13: #{tpu_custom_call.1} parent=1 // pred_fallthru
      _
    // Predicated region
    $region14: #{tpu_custom_call.1} parent=1 // pred_check
      _
    $region15: #{tpu_custom_call.1} parent=1 // pred_check_branch
      %36 = sbr.rel (0) target = $region17
    $region16: #{tpu_custom_call.1} parent=1 // pred_region
      %37 = dma.done [#allocation3], 128
    $region17: #{tpu_custom_call.1} parent=1 // pred_fallthru
      _
    // Predicated region
    $region18: #{tpu_custom_call.1} parent=1 // pred_check
      _
    $region19: #{tpu_custom_call.1} parent=1 // pred_check_branch
      %39 = sbr.rel (0) target = $region21
    $region20: #{tpu_custom_call.1} parent=1 // pred_region
      %40 = dma.done [#allocation6], 3072
    $region21: #{tpu_custom_call.1} parent=1 // pred_fallthru
      _
    %v42 = vld [vmem:[#allocation2] sm:$0xff]
    %v43 = vld [vmem:[#allocation5] sm:$0xf]
    %v44 = vld [vmem:[#allocation5 + $0x4] sm:$0xf]
    %v45 = vld [vmem:[#allocation5 + $0x8] sm:$0xf]
    %v46 = vld [vmem:[#allocation5 + $0xc] sm:$0xf]
    %v47 = vld [vmem:[#allocation5 + $0x10] sm:$0xf]
    %v48 = vld [vmem:[#allocation5 + $0x14] sm:$0xf]
    %v49 = vld [vmem:[#allocation5 + $0x18] sm:$0xf]
    %v50 = vld [vmem:[#allocation5 + $0x1c] sm:$0xf]
    %v51 = vld [vmem:[#allocation5 + $0x20] sm:$0xf]
    %v52 = vld [vmem:[#allocation5 + $0x24] sm:$0xf]
    %v53 = vld [vmem:[#allocation5 + $0x28] sm:$0xf]
    %v54 = vld [vmem:[#allocation5 + $0x2c] sm:$0xf]
    %v55 = vld [vmem:[#allocation5 + $0x30] sm:$0xf]
    %v56 = vld [vmem:[#allocation5 + $0x34] sm:$0xf]
    %v57 = vld [vmem:[#allocation5 + $0x38] sm:$0xf]
    %v58 = vld [vmem:[#allocation5 + $0x3c] sm:$0xf]
    %v59 = vld [vmem:[%s2] sm:$0x1]
    %v60 = vpack.c.bf16 %v42, %v42
    %v62 = vlaneseq
    %v63 = vshrl.u32 %v62, 7
    %v64 = vsub.s32 0, %v63
    %v65 = vrot.slane %v59, %v64
    %v83 = vunpack.c.l.b16 %v43
    %v84 = vunpack.c.l.b16 %v44
    %v85 = vunpack.c.l.b16 %v45
    %v86 = vunpack.c.l.b16 %v46
    %v87 = vunpack.c.l.b16 %v47
    %v88 = vunpack.c.l.b16 %v48
    %v89 = vunpack.c.l.b16 %v49
    %v90 = vunpack.c.l.b16 %v50
    %v91 = vunpack.c.l.b16 %v51
    %v92 = vunpack.c.l.b16 %v52
    %v93 = vunpack.c.l.b16 %v53
    %v94 = vunpack.c.l.b16 %v54
    %v95 = vunpack.c.l.b16 %v55
    %v96 = vunpack.c.l.b16 %v56
    %v97 = vunpack.c.l.b16 %v57
    %v98 = vunpack.c.l.b16 %v58
    %v99 = vpack.c.b16 %v84, %v83
    %v100 = vpack.c.b16 %v86, %v85
    %v101 = vpack.c.b16 %v88, %v87
    %v102 = vpack.c.b16 %v90, %v89
    %v103 = vpack.c.b16 %v92, %v91
    %v104 = vpack.c.b16 %v94, %v93
    %v105 = vpack.c.b16 %v96, %v95
    %v106 = vpack.c.b16 %v98, %v97
    %115 = vmatprep.subr.bf16.mxu0 0
    %116 = vmatpush1.bf16.msra.mxu0 %v99
    %117 = vmatprep.subr.bf16.mxu0 0
    %118 = vmatpush1.bf16.msra.mxu0 %v100
    %119 = vmatprep.subr.bf16.mxu0 0
    %120 = vmatpush1.bf16.msra.mxu0 %v101
    %121 = vmatprep.subr.bf16.mxu0 0
    %122 = vmatpush1.bf16.msra.mxu0 %v102
    %123 = vmatprep.subr.bf16.mxu0 0
    %124 = vmatpush1.bf16.msra.mxu0 %v103
    %125 = vmatprep.subr.bf16.mxu0 0
    %126 = vmatpush1.bf16.msra.mxu0 %v104
    %127 = vmatprep.subr.bf16.mxu0 0
    %128 = vmatpush1.bf16.msra.mxu0 %v105
    %129 = vmatprep.subr.bf16.mxu0 0
    %130 = vmatpush1.bf16.msra.mxu0 %v106
    %131 = vmatprep.subr.bf16.mxu0 0
    %132 = vmatpush1.bf16.msra.mxu0 0
    %133 = vmatprep.subr.bf16.mxu0 0
    %134 = vmatpush1.bf16.msra.mxu0 0
    %135 = vmatprep.subr.bf16.mxu0 0
    %136 = vmatpush1.bf16.msra.mxu0 0
    %137 = vmatprep.subr.bf16.mxu0 0
    %138 = vmatpush1.bf16.msra.mxu0 0
    %139 = vmatprep.subr.bf16.mxu0 0
    %140 = vmatpush1.bf16.msra.mxu0 0
    %141 = vmatprep.subr.bf16.mxu0 0
    %142 = vmatpush1.bf16.msra.mxu0 0
    %143 = vmatprep.subr.bf16.mxu0 0
    %144 = vmatpush1.bf16.msra.mxu0 0
    %145 = vmatprep.subr.bf16.mxu0 0
    %146 = vmatpush1.bf16.msra.mxu0 0
    %147 = vmatprep.mubr.bf16.mxu0 0
    %148 = vmatmul.mubr.bf16.gmra.mrb[0].mxu0 %v60
    %v149 = vpop.f32.mrb[0].mxu0
    %v150 = vadd.f32 %v65, %v149
    %v151 = vpop.f32.mrb[0].mxu0
    %v152 = vpop.f32.mrb[0].mxu0
    %v153 = vpop.f32.mrb[0].mxu0
    %154 = vdwg.mxu0
    %v155 = vmax.f32 %v150, 0.0
    %s156 = scalar_lea.vmem [#allocation5], 64
    %v157 = vld [vmem:[%s156] sm:$0xf]
    %v158 = vld [vmem:[%s156 + $0x4] sm:$0xf]
    %v159 = vld [vmem:[%s156 + $0x8] sm:$0xf]
    %v160 = vld [vmem:[%s156 + $0xc] sm:$0xf]
    %v161 = vld [vmem:[%s156 + $0x10] sm:$0xf]
    %v162 = vld [vmem:[%s156 + $0x14] sm:$0xf]
    %v163 = vld [vmem:[%s156 + $0x18] sm:$0xf]
    %v164 = vld [vmem:[%s156 + $0x1c] sm:$0xf]
    %v165 = vld [vmem:[%s156 + $0x20] sm:$0xf]
    %v166 = vld [vmem:[%s156 + $0x24] sm:$0xf]
    %v167 = vld [vmem:[%s156 + $0x28] sm:$0xf]
    %v168 = vld [vmem:[%s156 + $0x2c] sm:$0xf]
    %v169 = vld [vmem:[%s156 + $0x30] sm:$0xf]
    %v170 = vld [vmem:[%s156 + $0x34] sm:$0xf]
    %v171 = vld [vmem:[%s156 + $0x38] sm:$0xf]
    %v172 = vld [vmem:[%s156 + $0x3c] sm:$0xf]
    %s173 = scalar_lea.vmem %s2, 1
    %v174 = vld [vmem:[%s173] sm:$0x1]
    %v175 = vpack.c.bf16 %v155, %v155
    %v177 = vlaneseq
    %v178 = vshrl.u32 %v177, 7
    %v179 = vsub.s32 0, %v178
    %v180 = vrot.slane %v174, %v179
    %v198 = vunpack.c.l.b16 %v157
    %v199 = vunpack.c.l.b16 %v158
    %v200 = vunpack.c.l.b16 %v159
    %v201 = vunpack.c.l.b16 %v160
    %v202 = vunpack.c.l.b16 %v161
    %v203 = vunpack.c.l.b16 %v162
    %v204 = vunpack.c.l.b16 %v163
    %v205 = vunpack.c.l.b16 %v164
    %v206 = vunpack.c.l.b16 %v165
    %v207 = vunpack.c.l.b16 %v166
    %v208 = vunpack.c.l.b16 %v167
    %v209 = vunpack.c.l.b16 %v168
    %v210 = vunpack.c.l.b16 %v169
    %v211 = vunpack.c.l.b16 %v170
    %v212 = vunpack.c.l.b16 %v171
    %v213 = vunpack.c.l.b16 %v172
    %v214 = vpack.c.b16 %v199, %v198
    %v215 = vpack.c.b16 %v201, %v200
    %v216 = vpack.c.b16 %v203, %v202
    %v217 = vpack.c.b16 %v205, %v204
    %v218 = vpack.c.b16 %v207, %v206
    %v219 = vpack.c.b16 %v209, %v208
    %v220 = vpack.c.b16 %v211, %v210
    %v221 = vpack.c.b16 %v213, %v212
    %230 = vmatprep.subr.bf16.mxu0 0
    %231 = vmatpush1.bf16.msra.mxu0 %v214
    %232 = vmatprep.subr.bf16.mxu0 0
    %233 = vmatpush1.bf16.msra.mxu0 %v215
    %234 = vmatprep.subr.bf16.mxu0 0
    %235 = vmatpush1.bf16.msra.mxu0 %v216
    %236 = vmatprep.subr.bf16.mxu0 0
    %237 = vmatpush1.bf16.msra.mxu0 %v217
    %238 = vmatprep.subr.bf16.mxu0 0
    %239 = vmatpush1.bf16.msra.mxu0 %v218
    %240 = vmatprep.subr.bf16.mxu0 0
    %241 = vmatpush1.bf16.msra.mxu0 %v219
    %242 = vmatprep.subr.bf16.mxu0 0
    %243 = vmatpush1.bf16.msra.mxu0 %v220
    %244 = vmatprep.subr.bf16.mxu0 0
    %245 = vmatpush1.bf16.msra.mxu0 %v221
    %246 = vmatprep.subr.bf16.mxu0 0
    %247 = vmatpush1.bf16.msra.mxu0 0
    %248 = vmatprep.subr.bf16.mxu0 0
    %249 = vmatpush1.bf16.msra.mxu0 0
    %250 = vmatprep.subr.bf16.mxu0 0
    %251 = vmatpush1.bf16.msra.mxu0 0
    %252 = vmatprep.subr.bf16.mxu0 0
    %253 = vmatpush1.bf16.msra.mxu0 0
    %254 = vmatprep.subr.bf16.mxu0 0
    %255 = vmatpush1.bf16.msra.mxu0 0
    %256 = vmatprep.subr.bf16.mxu0 0
    %257 = vmatpush1.bf16.msra.mxu0 0
    %258 = vmatprep.subr.bf16.mxu0 0
    %259 = vmatpush1.bf16.msra.mxu0 0
    %260 = vmatprep.subr.bf16.mxu0 0
    %261 = vmatpush1.bf16.msra.mxu0 0
    %262 = vmatprep.mubr.bf16.mxu0 0
    %263 = vmatmul.mubr.bf16.gmra.mrb[0].mxu0 %v175
    %v264 = vpop.f32.mrb[0].mxu0
    %v265 = vadd.f32 %v180, %v264
    %v266 = vpop.f32.mrb[0].mxu0
    %v267 = vpop.f32.mrb[0].mxu0
    %v268 = vpop.f32.mrb[0].mxu0
    %269 = vdwg.mxu0
    %v270 = vmax.f32 %v265, 0.0
    %s271 = scalar_lea.vmem [#allocation5], 128
    %v272 = vld [vmem:[%s271] sm:$0xf]
    %v273 = vld [vmem:[%s271 + $0x4] sm:$0xf]
    %v274 = vld [vmem:[%s271 + $0x8] sm:$0xf]
    %v275 = vld [vmem:[%s271 + $0xc] sm:$0xf]
    %v276 = vld [vmem:[%s271 + $0x10] sm:$0xf]
    %v277 = vld [vmem:[%s271 + $0x14] sm:$0xf]
    %v278 = vld [vmem:[%s271 + $0x18] sm:$0xf]
    %v279 = vld [vmem:[%s271 + $0x1c] sm:$0xf]
    %v280 = vld [vmem:[%s271 + $0x20] sm:$0xf]
    %v281 = vld [vmem:[%s271 + $0x24] sm:$0xf]
    %v282 = vld [vmem:[%s271 + $0x28] sm:$0xf]
    %v283 = vld [vmem:[%s271 + $0x2c] sm:$0xf]
    %v284 = vld [vmem:[%s271 + $0x30] sm:$0xf]
    %v285 = vld [vmem:[%s271 + $0x34] sm:$0xf]
    %v286 = vld [vmem:[%s271 + $0x38] sm:$0xf]
    %v287 = vld [vmem:[%s271 + $0x3c] sm:$0xf]
    %s288 = scalar_lea.vmem %s2, 2
    %v289 = vld [vmem:[%s288] sm:$0x1]
    %v290 = vpack.c.bf16 %v270, %v270
    %v292 = vlaneseq
    %v293 = vshrl.u32 %v292, 7
    %v294 = vsub.s32 0, %v293
    %v295 = vrot.slane %v289, %v294
    %v313 = vunpack.c.l.b16 %v272
    %v314 = vunpack.c.l.b16 %v273
    %v315 = vunpack.c.l.b16 %v274
    %v316 = vunpack.c.l.b16 %v275
    %v317 = vunpack.c.l.b16 %v276
    %v318 = vunpack.c.l.b16 %v277
    %v319 = vunpack.c.l.b16 %v278
    %v320 = vunpack.c.l.b16 %v279
    %v321 = vunpack.c.l.b16 %v280
    %v322 = vunpack.c.l.b16 %v281
    %v323 = vunpack.c.l.b16 %v282
    %v324 = vunpack.c.l.b16 %v283
    %v325 = vunpack.c.l.b16 %v284
    %v326 = vunpack.c.l.b16 %v285
    %v327 = vunpack.c.l.b16 %v286
    %v328 = vunpack.c.l.b16 %v287
    %v329 = vpack.c.b16 %v314, %v313
    %v330 = vpack.c.b16 %v316, %v315
    %v331 = vpack.c.b16 %v318, %v317
    %v332 = vpack.c.b16 %v320, %v319
    %v333 = vpack.c.b16 %v322, %v321
    %v334 = vpack.c.b16 %v324, %v323
    %v335 = vpack.c.b16 %v326, %v325
    %v336 = vpack.c.b16 %v328, %v327
    %345 = vmatprep.subr.bf16.mxu0 0
    %346 = vmatpush1.bf16.msra.mxu0 %v329
    %347 = vmatprep.subr.bf16.mxu0 0
    %348 = vmatpush1.bf16.msra.mxu0 %v330
    %349 = vmatprep.subr.bf16.mxu0 0
    %350 = vmatpush1.bf16.msra.mxu0 %v331
    %351 = vmatprep.subr.bf16.mxu0 0
    %352 = vmatpush1.bf16.msra.mxu0 %v332
    %353 = vmatprep.subr.bf16.mxu0 0
    %354 = vmatpush1.bf16.msra.mxu0 %v333
    %355 = vmatprep.subr.bf16.mxu0 0
    %356 = vmatpush1.bf16.msra.mxu0 %v334
    %357 = vmatprep.subr.bf16.mxu0 0
    %358 = vmatpush1.bf16.msra.mxu0 %v335
    %359 = vmatprep.subr.bf16.mxu0 0
    %360 = vmatpush1.bf16.msra.mxu0 %v336
    %361 = vmatprep.subr.bf16.mxu0 0
    %362 = vmatpush1.bf16.msra.mxu0 0
    %363 = vmatprep.subr.bf16.mxu0 0
    %364 = vmatpush1.bf16.msra.mxu0 0
    %365 = vmatprep.subr.bf16.mxu0 0
    %366 = vmatpush1.bf16.msra.mxu0 0
    %367 = vmatprep.subr.bf16.mxu0 0
    %368 = vmatpush1.bf16.msra.mxu0 0
    %369 = vmatprep.subr.bf16.mxu0 0
    %370 = vmatpush1.bf16.msra.mxu0 0
    %371 = vmatprep.subr.bf16.mxu0 0
    %372 = vmatpush1.bf16.msra.mxu0 0
    %373 = vmatprep.subr.bf16.mxu0 0
    %374 = vmatpush1.bf16.msra.mxu0 0
    %375 = vmatprep.subr.bf16.mxu0 0
    %376 = vmatpush1.bf16.msra.mxu0 0
    %377 = vmatprep.mubr.bf16.mxu0 0
    %378 = vmatmul.mubr.bf16.gmra.mrb[0].mxu0 %v290
    %v379 = vpop.f32.mrb[0].mxu0
    %v380 = vadd.f32 %v295, %v379
    %v381 = vpop.f32.mrb[0].mxu0
    %v382 = vpop.f32.mrb[0].mxu0
    %v383 = vpop.f32.mrb[0].mxu0
    %384 = vdwg.mxu0
    %v385 = vmax.f32 %v380, 0.0
    %386 = vst [vmem:[#allocation7] sm:$0xff] %v385
    // Predicated region
    $region22: #{tpu_custom_call.1} parent=1 // pred_check
      _
    $region23: #{tpu_custom_call.1} parent=1 // pred_check_branch
      %388 = sbr.rel (0) target = $region25
    $region24: #{tpu_custom_call.1} parent=1 // pred_region
      %s390 = ssub.s32 128, 128
      %391 = vsyncadd [#allocation4], %s390
      %s393 = sshll.u32 [#allocation7], 4
      %s394 = int_to_ptr.vmem [resolvable:$true] %s393
      %396 = dma.vmem_to_hbm [thread:$0]  %s394, 128, %s3, [#allocation4]
    $region25: #{tpu_custom_call.1} parent=1 // pred_fallthru
      _
    // Predicated region
    $region26: #{tpu_custom_call.1} parent=1 // pred_check
      _
    $region27: #{tpu_custom_call.1} parent=1 // pred_check_branch
      %398 = sbr.rel (0) target = $region29
    $region28: #{tpu_custom_call.1} parent=1 // pred_region
      %399 = dma.done [#allocation4], 128
    $region29: #{tpu_custom_call.1} parent=1 // pred_fallthru
      _
    %400 = vsyncpa [#allocation3], 1
    %401 = vsyncpa [#allocation6], 1
    %402 = vsyncpa [#allocation4], 1

</llo_original>
